<compile_context>
chip_gen: v7x
topology: tpu7x:2x2x1
jax: 0.10.0
libtpu: 0.0.40
codegen_flags: <defaults>
</compile_context>

<pallas_src>
import functools

import jax
import jax.numpy as jnp
from jax import lax
from jax.experimental import pallas as pl
from jax.experimental.pallas import tpu as pltpu


def _round_up(a, b):
    return -(-a // b) * b


def _dws_kernel(*refs, taps, c_in_p, tl, row_off, lane_off, use_im2col,
                precision, split_window):
    """One (batch, length-tile) grid step.

    single-window : refs = (xw, w, shift, out)
        xw    : (1, C_eff, TL + halo)  overlapping window (element-offset DMA)
    split-window  : refs = (xm, xh, w, shift, out)   [fallback]
        xm    : (1, C_eff, TL), xh : (1, C_eff, halo)
    w     : (C_out, K*C_in) if im2col else (K, C_out, C_in)   fused bn*pw*dw
    shift : (C_out, 1) f32  folded BN shift
    out   : (1, C_out, TL)
    """
    if split_window:
        xm_ref, xh_ref, w_ref, shift_ref, o_ref = refs
        xwin = jnp.concatenate([xm_ref[0], xh_ref[0]], axis=-1)

        def tap(t):
            return xwin[row_off[t]:row_off[t] + c_in_p,
                        lane_off[t]:lane_off[t] + tl]
    else:
        xw_ref, w_ref, shift_ref, o_ref = refs

        def tap(t):
            # Static slice of the ref view -> shifted load, no concat buffer.
            return xw_ref[0, row_off[t]:row_off[t] + c_in_p,
                          lane_off[t]:lane_off[t] + tl]

    if use_im2col:
        # Single matmul over the full K*C_in contraction: one MXU pop, no K-way
        # accumulator RMW, better systolic-array fill for small channel counts.
        xcat = jnp.concatenate([tap(t) for t in range(taps)], axis=0)
        y = jnp.dot(w_ref[...], xcat, preferred_element_type=jnp.float32,
                    precision=precision)
        y = y + shift_ref[...]
    else:
        # K accumulating matmuls; acc starts at the BN shift (saves one VPU add
        # pass).  On v7x Mosaic keeps this accumulation on the MXU result path.
        y = jnp.broadcast_to(shift_ref[...], (o_ref.shape[1], tl))
        for t in range(taps):
            y = y + jnp.dot(w_ref[t], tap(t),
                            preferred_element_type=jnp.float32,
                            precision=precision)

    o_ref[0] = jnp.maximum(y, 0.0).astype(o_ref.dtype)


def _forward(x, w_dw, w_pw, gamma, beta, run_mean, run_var, *, stride, padding,
             dilation, bn_eps, compute_dtype, tile_l, use_im2col,
             vmem_budget_bytes, single_window):
    n, c_in, l = x.shape
    c_out = w_pw.shape[0]
    k = w_dw.shape[1]
    l_out = (l + 2 * padding - dilation * (k - 1) - 1) // stride + 1
    out_dtype = x.dtype

    comp_bytes = jnp.dtype(compute_dtype).itemsize
    out_bytes = jnp.dtype(out_dtype).itemsize
    sub = 16 if comp_bytes == 2 else 8
    c_in_p = _round_up(c_in, sub)
    c_out_p = _round_up(c_out, sub)
    c_eff = stride * c_in_p                 # phase-stacked channels

    # Per-tap (row, lane) offsets into the phase-stacked input: tap t reads
    # phase (t*dil) % stride at phase-domain lane offset (t*dil) // stride, so
    # every access is unit-stride regardless of the conv stride.
    row_off = tuple(((t * dilation) % stride) * c_in_p for t in range(k))
    lane_off = tuple((t * dilation) // stride for t in range(k))
    halo_ph = ((k - 1) * dilation) // stride
    halo_blk = max(128, _round_up(max(halo_ph, 1), 128))

    if use_im2col is None:
        # One wide matmul while the contraction / im2col slab stays small;
        # K accumulating matmuls otherwise (real QuartzNet K up to 87).
        use_im2col = k * c_in_p <= 1024

    def footprint(tl_):
        win = tl_ + halo_blk
        b = 2 * c_eff * win * comp_bytes               # double-buffered input
        b += 2 * c_out_p * tl_ * out_bytes             # double-buffered output
        b += 2 * (k * c_out_p * c_in_p * comp_bytes + c_out_p * 4)  # weights
        b += c_out_p * tl_ * 4                         # f32 accumulator
        if use_im2col:
            b += k * c_in_p * tl_ * comp_bytes         # im2col slab
        return b + (1 << 20)

    # ---- length tiling: largest lane-dense tile under the VMEM budget.
    if tile_l is None:
        upper = max(128, min(2048, _round_up(l_out, 128)))
        if n == 1 and l_out > 128:
            # keep >= 2 grid steps so both TensorCores get work on v7x.
            upper = min(upper, _round_up(pl.cdiv(l_out, 2), 128))
        tile_l = 128
        for cand in (2048, 1024, 512, 256, 128):
            if cand <= upper and footprint(cand) <= vmem_budget_bytes:
                tile_l = cand
                break
    tile_l = _round_up(max(tile_l, 128), 128)
    if not single_window:
        tile_l = _round_up(tile_l, halo_blk)   # halo block index must be integral

    n_lt = pl.cdiv(l_out, tile_l)
    l_out_pad = n_lt * tile_l
    l_ph = n_lt * tile_l + halo_blk            # padded phase-domain length
    win = tile_l + halo_blk

    # ---- fold eval BatchNorm + fuse dw taps into the pw weights (wrapper).
    scale = gamma / jnp.sqrt(run_var + bn_eps)
    shift = beta - run_mean * scale
    w_dw_p = jnp.pad(w_dw, ((0, c_in_p - c_in), (0, 0)))
    w_pw_p = jnp.pad(w_pw, ((0, c_out_p - c_out), (0, c_in_p - c_in)))
    scale_p = jnp.pad(scale, (0, c_out_p - c_out))
    shift_p = jnp.pad(shift, (0, c_out_p - c_out))
    # W_k[o, c] = scale[o] * w_pw[o, c] * w_dw[c, k]   (tiny: K*C_out*C_in)
    w_fused = jnp.einsum("oc,ck->koc", w_pw_p * scale_p[:, None], w_dw_p)
    w_fused = w_fused.astype(compute_dtype)
    if use_im2col:
        w_fused = w_fused.transpose(1, 0, 2).reshape(c_out_p, k * c_in_p)
    shift_col = shift_p.reshape(c_out_p, 1).astype(jnp.float32)

    # ---- single wrapper pad (+ phase de-interleave for stride > 1).
    x_c = jnp.pad(x.astype(compute_dtype), ((0, 0), (0, c_in_p - c_in), (0, 0)))
    total = l_ph * stride                      # conv-padded length we need
    right = total - l - padding
    if right >= 0:
        x_t = jnp.pad(x_c, ((0, 0), (0, 0), (padding, right)))
    else:
        x_t = jnp.pad(x_c, ((0, 0), (0, 0), (padding, 0)))[:, :, :total]
    if stride == 1:
        x_ph = x_t
    else:
        # (N, C, L_ph, s) -> (N, s, C, L_ph) -> (N, s*C, L_ph); phase p occupies
        # channel rows [p*c_in_p, (p+1)*c_in_p).
        x_ph = x_t.reshape(n, c_in_p, l_ph, stride).transpose(0, 3, 1, 2)
        x_ph = x_ph.reshape(n, c_eff, l_ph)

    kernel = functools.partial(
        _dws_kernel, taps=k, c_in_p=c_in_p, tl=tile_l, row_off=row_off,
        lane_off=lane_off, use_im2col=use_im2col,
        precision=(lax.Precision.HIGHEST if compute_dtype == jnp.float32
                   else lax.Precision.DEFAULT),
        split_window=not single_window)

    if single_window:
        # One overlapping window per step (element-offset indexing on the
        # length dim; offsets and width are 128-aligned).
        x_specs = [pl.BlockSpec((1, c_eff, pl.Element(win)),
                                lambda b, j: (b, 0, j * tile_l))]
        x_args = [x_ph]
    else:
        # Fallback: non-overlapping main block + 128-multiple halo block.
        r = tile_l // halo_blk
        x_specs = [pl.BlockSpec((1, c_eff, tile_l), lambda b, j: (b, 0, j)),
                   pl.BlockSpec((1, c_eff, halo_blk),
                                lambda b, j: (b, 0, (j + 1) * r))]
        x_args = [x_ph, x_ph]

    if use_im2col:
        w_spec = pl.BlockSpec((c_out_p, k * c_in_p), lambda b, j: (0, 0))
    else:
        w_spec = pl.BlockSpec((k, c_out_p, c_in_p), lambda b, j: (0, 0, 0))
    # NOTE: weights/shift are constant across the grid; single-buffering them
    # (pipeline_mode=pl.Buffered(1)) is a further VMEM saving at large C.

    out = pl.pallas_call(
        kernel,
        out_shape=jax.ShapeDtypeStruct((n, c_out_p, l_out_pad), out_dtype),
        grid_spec=pltpu.PrefetchScalarGridSpec(
            num_scalar_prefetch=0,
            grid=(n, n_lt),
            in_specs=x_specs + [w_spec,
                                pl.BlockSpec((c_out_p, 1), lambda b, j: (0, 0))],
            out_specs=pl.BlockSpec((1, c_out_p, tile_l), lambda b, j: (b, 0, j)),
        ),
        compiler_params=pltpu.CompilerParams(
            dimension_semantics=("parallel", "parallel"),
            vmem_limit_bytes=int(min(48 * 1024 * 1024,
                                     max(16 * 1024 * 1024,
                                         2 * footprint(tile_l))))),
    )(*x_args, w_fused, shift_col)

    if c_out_p != c_out or l_out_pad != l_out:
        out = out[:, :c_out, :l_out]
    return out


_SINGLE_WINDOW_OK = None  # tri-state cache: None=unknown, True/False=probed


def dws_conv_block1d(x, w_dw, w_pw, gamma, beta, run_mean, run_var, *,
                     stride=1, padding=1, dilation=1, groups=1, bn_eps=1e-5,
                     compute_dtype=jnp.bfloat16, tile_l=None, use_im2col=None,
                     vmem_budget_bytes=40 * 1024 * 1024):
    """x: (N, C_in, L) -> (N, C_out, L_out), dtype of x."""
    global _SINGLE_WINDOW_OK
    if groups != 1:
        # TODO(synk): groups > 1 (grouped pointwise conv + ChannelShuffle1d)
        # not implemented; the default module config uses groups=1 (no shuffle).
        raise NotImplementedError("groups > 1 not supported")
    # dropout_rate defaults to 0.0 (and eval mode) -> identity; bias=False.

    kw = dict(stride=stride, padding=padding, dilation=dilation, bn_eps=bn_eps,
              compute_dtype=compute_dtype, tile_l=tile_l, use_im2col=use_im2col,
              vmem_budget_bytes=vmem_budget_bytes)
    args = (x, w_dw, w_pw, gamma, beta, run_mean, run_var)
    if _SINGLE_WINDOW_OK is not False:
        try:
            out = _forward(*args, single_window=True, **kw)
            _SINGLE_WINDOW_OK = True
            return out
        except Exception:
            _SINGLE_WINDOW_OK = False   # element-offset windows unavailable
    return _forward(*args, single_window=False, **kw)


def _reference(x, w_dw, w_pw, gamma, beta, run_mean, run_var, *,
               stride, padding, dilation, bn_eps):
    """Pure-JAX reference mirroring Conv1d(dw)/Conv1d(1x1)/BN(eval)/ReLU."""
    c_in = x.shape[1]
    dw = lax.conv_general_dilated(
        x, w_dw[:, None, :], window_strides=(stride,),
        padding=[(padding, padding)], rhs_dilation=(dilation,),
        dimension_numbers=("NCH", "OIH", "NCH"), feature_group_count=c_in,
        precision=lax.Precision.HIGHEST)
    pw = jnp.einsum("oc,ncl->nol", w_pw, dw, precision=lax.Precision.HIGHEST)
    scale = gamma / jnp.sqrt(run_var + bn_eps)
    shift = beta - run_mean * scale
    return jnp.maximum(pw * scale[None, :, None] + shift[None, :, None], 0.0)


if __name__ == "__main__":
    C_IN, C_OUT, K, DIL, BN_EPS = 8, 16, 3, 1, 1e-5

    key = jax.random.PRNGKey(0)
    kdw, kpw, kg, kb, km, kv, kx = jax.random.split(key, 7)
    w_dw = 0.3 * jax.random.normal(kdw, (C_IN, K), jnp.float32)        # (C_in,1,K) squeezed
    w_pw = 0.3 * jax.random.normal(kpw, (C_OUT, C_IN), jnp.float32)    # (C_out,C_in,1) squeezed
    gamma = 1.0 + 0.1 * jax.random.normal(kg, (C_OUT,), jnp.float32)
    beta = 0.1 * jax.random.normal(kb, (C_OUT,), jnp.float32)
    run_mean = 0.1 * jax.random.normal(km, (C_OUT,), jnp.float32)
    run_var = jnp.abs(jax.random.normal(kv, (C_OUT,), jnp.float32)) + 0.5
    bn = (gamma, beta, run_mean, run_var)

    # (batch, seq_len, stride, padding, forced tile_l)
    cases = [(2, 32, 1, 1, None),     # stride-1, single length tile
             (2, 32, 2, 1, None),     # stride-2 (phase-stacked input path)
             (1, 300, 1, 1, 128)]     # multi-tile: exercises the halo window
    for ci, (n, l, stride, pad, tl) in enumerate(cases):
        x = jax.random.normal(jax.random.fold_in(kx, ci), (n, C_IN, l),
                              jnp.float32)
        ref = _reference(x, w_dw, w_pw, *bn, stride=stride, padding=pad,
                         dilation=DIL, bn_eps=BN_EPS)
        common = dict(stride=stride, padding=pad, dilation=DIL, bn_eps=BN_EPS,
                      tile_l=tl)

        # f32 compute (precision=HIGHEST): im2col and multi-tap kernel paths.
        for im2col in (True, False):
            out = dws_conv_block1d(x, w_dw, w_pw, *bn,
                                   compute_dtype=jnp.float32,
                                   use_im2col=im2col, **common)
            out = jax.block_until_ready(out)
            assert out.shape == ref.shape
            assert jnp.allclose(out, ref, atol=1e-4, rtol=1e-4), \
                f"f32 mismatch (case {ci}, im2col={im2col})"

        # default bf16 MXU path (f32 accumulation) — looser tolerance.
        out_bf = jax.block_until_ready(
            dws_conv_block1d(x, w_dw, w_pw, *bn, **common))
        assert jnp.allclose(out_bf, ref, atol=5e-2, rtol=5e-2), \
            f"bf16 mismatch (case {ci})"

    print("KERNEL_OK")
</pallas_src>

<mosaic_0001>
module attributes {stable_mosaic.version = 11 : i64} {
  func.func @_dws_kernel(%arg0: i32, %arg1: i32, %arg2: memref<1x8x128xf32, #tpu.memory_space<vmem>>, %arg3: memref<1x8x128xf32, #tpu.memory_space<vmem>>, %arg4: memref<16x24xf32, #tpu.memory_space<vmem>>, %arg5: memref<16x1xf32, #tpu.memory_space<vmem>>, %arg6: memref<1x16x128xf32, #tpu.memory_space<vmem>>) attributes {dimension_semantics = [#tpu.dimension_semantics<parallel>, #tpu.dimension_semantics<parallel>], iteration_bounds = array<i64: 2, 1>, scalar_prefetch = 0 : i64, scratch_operands = 0 : i64, tpu.core_type = #tpu.core_type<tc>, window_params = [{transform_indices = @transform_0, window_bounds = array<i64: 1, 8, 128>}, {transform_indices = @transform_1, window_bounds = array<i64: 1, 8, 128>}, {pipeline_mode = #tpu.pipeline_mode<synchronous>, transform_indices = @transform_2, window_bounds = array<i64: 16, 24>}, {pipeline_mode = #tpu.pipeline_mode<synchronous>, transform_indices = @transform_3, window_bounds = array<i64: 16, 1>}, {transform_indices = @transform_4, window_bounds = array<i64: 1, 16, 128>}]} {
    %c0 = arith.constant 0 : index
    %c0_0 = arith.constant 0 : index
    %c0_1 = arith.constant 0 : index
    %0 = vector.load %arg2[%c0, %c0_0, %c0_1] : memref<1x8x128xf32, #tpu.memory_space<vmem>>, vector<1x8x128xf32>
    %1 = vector.shape_cast %0 : vector<1x8x128xf32> to vector<8x128xf32>
    %c0_2 = arith.constant 0 : index
    %c0_3 = arith.constant 0 : index
    %c0_4 = arith.constant 0 : index
    %2 = vector.load %arg3[%c0_2, %c0_3, %c0_4] : memref<1x8x128xf32, #tpu.memory_space<vmem>>, vector<1x8x128xf32>
    %3 = vector.shape_cast %2 : vector<1x8x128xf32> to vector<8x128xf32>
    %4 = tpu.concatenate %1, %3 in 1 : vector<8x128xf32>, vector<8x128xf32> -> vector<8x256xf32>
    %5 = vector.extract_strided_slice %4 {offsets = [0, 0], sizes = [8, 128], strides = [1, 1]} : vector<8x256xf32> to vector<8x128xf32>
    %6 = vector.extract_strided_slice %4 {offsets = [0, 1], sizes = [8, 128], strides = [1, 1]} : vector<8x256xf32> to vector<8x128xf32>
    %7 = vector.extract_strided_slice %4 {offsets = [0, 2], sizes = [8, 128], strides = [1, 1]} : vector<8x256xf32> to vector<8x128xf32>
    %8 = tpu.concatenate %5, %6, %7 in 0 : vector<8x128xf32>, vector<8x128xf32>, vector<8x128xf32> -> vector<24x128xf32>
    %c0_5 = arith.constant 0 : index
    %c0_6 = arith.constant 0 : index
    %9 = vector.load %arg4[%c0_5, %c0_6] : memref<16x24xf32, #tpu.memory_space<vmem>>, vector<16x24xf32>
    %cst = arith.constant dense<0.000000e+00> : vector<16x128xf32>
    %10 = tpu.matmul %9, %8, %cst {dimension_numbers = #tpu.dot_dimension_numbers<[1], [0], [0], [1], [0, 0, 1, 1], [], []>, precision = #tpu.contract_precision<fp32>} : vector<16x24xf32>, vector<24x128xf32>, vector<16x128xf32> -> vector<16x128xf32>
    %c0_7 = arith.constant 0 : index
    %c0_8 = arith.constant 0 : index
    %11 = vector.load %arg5[%c0_7, %c0_8] : memref<16x1xf32, #tpu.memory_space<vmem>>, vector<16x1xf32>
    %12 = vector.broadcast %11 : vector<16x1xf32> to vector<16x128xf32>
    %13 = arith.addf %10, %12 : vector<16x128xf32>
    %cst_9 = arith.constant 0.000000e+00 : f32
    %14 = vector.broadcast %cst_9 : f32 to vector<16x128xf32>
    %15 = arith.maximumf %13, %14 : vector<16x128xf32>
    %c0_10 = arith.constant 0 : index
    %c0_11 = arith.constant 0 : index
    %c0_12 = arith.constant 0 : index
    %16 = vector.load %arg6[%c0_10, %c0_11, %c0_12] : memref<1x16x128xf32, #tpu.memory_space<vmem>>, vector<1x16x128xf32>
    %17 = vector.shape_cast %16 : vector<1x16x128xf32> to vector<16x128xf32>
    %18 = vector.shape_cast %15 : vector<16x128xf32> to vector<1x16x128xf32>
    tpu.vector_store %arg6[%c0_10, %c0_11, %c0_12], %18 {strides = array<i32>} : memref<1x16x128xf32, #tpu.memory_space<vmem>>, vector<1x16x128xf32>,
    return
  }
  func.func @transform_0(%arg0: i32, %arg1: i32) -> (i32, i32, i32) {
    %c0_i32 = arith.constant 0 : i32
    %c0_i32_0 = arith.constant 0 : i32
    return %arg0, %c0_i32, %arg1 : i32, i32, i32
  }
  func.func @transform_1(%arg0: i32, %arg1: i32) -> (i32, i32, i32) {
    %c1_i32 = arith.constant 1 : i32
    %0 = arith.addi %arg1, %c1_i32 : i32
    %c1_i32_0 = arith.constant 1 : i32
    %1 = arith.muli %0, %c1_i32_0 : i32
    %c0_i32 = arith.constant 0 : i32
    %c0_i32_1 = arith.constant 0 : i32
    return %arg0, %c0_i32, %1 : i32, i32, i32
  }
  func.func @transform_2(%arg0: i32, %arg1: i32) -> (i32, i32) {
    %c0_i32 = arith.constant 0 : i32
    %c0_i32_0 = arith.constant 0 : i32
    %c0_i32_1 = arith.constant 0 : i32
    return %c0_i32, %c0_i32_0 : i32, i32
  }
  func.func @transform_3(%arg0: i32, %arg1: i32) -> (i32, i32) {
    %c0_i32 = arith.constant 0 : i32
    %c0_i32_0 = arith.constant 0 : i32
    %c0_i32_1 = arith.constant 0 : i32
    return %c0_i32, %c0_i32_0 : i32, i32
  }
  func.func @transform_4(%arg0: i32, %arg1: i32) -> (i32, i32, i32) {
    %c0_i32 = arith.constant 0 : i32
    %c0_i32_0 = arith.constant 0 : i32
    return %arg0, %c0_i32, %arg1 : i32, i32, i32
  }
}

</mosaic_0001>

<llo_original>
// kernel: tpu_custom_call.1
$region0: #{tpu_custom_call.1}
  #allocation0 [shape = 'u32[]', space=smem, size = 0x4, offset = 0x4, fixed_abs, tag = 'smem constant byte address 0x4 - core index']
  #allocation1 [shape = 'u32[144,128]{1,0:T(1,128)}', space=vmem, size = 0x12000, scoped, tag = 'internal scratch']
  %s0 = inlined_call_operand.hbm [shape: f32[2,8,256], index: 0, kind: input, shape index: {}]
  %s1 = inlined_call_operand.hbm [shape: f32[2,8,256], index: 1, kind: input, shape index: {}]
  %s2 = inlined_call_operand.vmem [shape: f32[16,24], index: 2, kind: input, shape index: {}]
  %s3 = inlined_call_operand.vmem [shape: f32[16,1], index: 3, kind: input, shape index: {}]
  %s4 = inlined_call_operand.hbm [shape: f32[2,16,128], index: 4, kind: output, shape index: {}]
  %s5 = sld [smem:[#allocation0]]
  $region57: #{tpu_custom_call.1} parent=0
    _
  %s7 = ssub.s32 1, %s5
  %s8 = scalar_select 0, %s7, %s5
  $region1: #{tpu_custom_call.1} parent=0
    #allocation2 [shape = 'u8[8192]{0}', space=vmem, size = 0x2000, scoped, tag = 'input window, operand 0']
    #allocation3 [shape = 's32[2]{0}', space=sflag, size = 0x8, scoped, tag = 'scoped memory for tpu_custom_call.1']
    #allocation4 [shape = 's32[2]{0}', space=sflag, size = 0x8, scoped, tag = 'scoped memory for tpu_custom_call.1']
    #allocation5 [shape = 'u8[8192]{0}', space=vmem, size = 0x2000, scoped, tag = 'input window, operand 1']
    #allocation6 [shape = 's32[2]{0}', space=sflag, size = 0x8, scoped, tag = 'scoped memory for tpu_custom_call.1']
    #allocation7 [shape = 'u8[16384]{0}', space=vmem, size = 0x4000, scoped, tag = 'output window, operand 0']
    %9 = vsyncpa [#allocation3], 0
    %s10 = scalar_lea.sflag [#allocation3], 1
    %11 = vsyncpa %s10, 0
    %12 = vsyncpa [#allocation6], 0
    %s13 = scalar_lea.sflag [#allocation6], 1
    %14 = vsyncpa %s13, 0
    %15 = vsyncpa [#allocation4], 0
    %s16 = scalar_lea.sflag [#allocation4], 1
    %17 = vsyncpa %s16, 0
    loop: start=0, step=1, limit=4
    $region2: #{tpu_custom_call.1} parent=1 // loop_pre_header
      _
    $region3: #{tpu_custom_call.1} parent=1 // loop_header
      %s19 = sphi 0, %s23
      %p20 = scmp.ge.s32.totalorder %s19, 4
      %s26 = sphi 0, %s38
      %s27 = sphi 0, %s34
      %s28 = sphi 0, %s26
      %s29 = sphi 0, %s27
      %s30 = sphi 0, %s28
      %s31 = sphi 0, %s29
      %s43 = sphi 0, %s45
      %s46 = sphi 0, %s43
      %s47 = sphi 0, %s46
      %s63 = sphi 0, %s47
      %s73 = sphi 0, %s75
      %s76 = sphi 0, %s73
      %s77 = sphi 0, %s76
      %s93 = sphi 0, %s77
      %s97 = sphi 0, %s97
      %s99 = sphi 0, %s97
      %s100 = sphi 0, %s99
      %s114 = sphi 0, %s100
      %s118 = sphi 0, %s118
      %s120 = sphi 0, %s118
      %s121 = sphi 0, %s120
      %s135 = sphi 0, %s121
      %s143 = sphi 0, %s145
      %s146 = sphi 0, %s143
      %s147 = sphi 0, %s146
      %s163 = sphi 0, %s147
    $region4: #{tpu_custom_call.1} parent=1 // loop_header_branch
      %22 = sbr.rel (%p20) target = $region8
    $region5: #{tpu_custom_call.1} parent=1 // loop_body
      %s24 = ssub.s32 %s19, 1
      %s25 = ssub.s32 %s19, 2
      %s32 = sadd.s32 1, %s27
      %p33 = scmp.ge.s32.totalorder %s32, 1
      %s34 = scalar_select %p33, 0, %s32
      %s35 = sadd.s32 1, %s26
      %s36 = scalar_select %p33, %s35, %s26
      %p37 = scmp.ge.s32.totalorder %s36, 2
      %s38 = scalar_select %p37, 0, %s36
      %s39 = ssub.s32 %s26, %s38
      %s40 = ssub.s32 %s27, %s34
      %s41 = sor.u32 %s39, %s40
      %p42 = scmp.eq.s32.totalorder %s41, 0
      %s44 = sadd.s32 %s43, 1
      %s45 = scalar_select %p42, %s43, %s44
      %p48 = pneg %p42
      %p49 = scmp.eq.s32.totalorder %s19, 1
      %p50 = por %p48, %p49
      %p51 = scmp.ne.s32.totalorder %s43, %s46
      %p52 = scmp.eq.s32.totalorder %s19, 0
      %p53 = por %p51, %p52
      %p54 = scmp.ne.s32.totalorder %s43, %s46
      %p55 = scmp.eq.s32.totalorder %s24, 1
      %p56 = por %p54, %p55
      %p57 = scmp.ne.s32.totalorder %s46, %s47
      %p58 = scmp.eq.s32.totalorder %s24, 0
      %p59 = por %p57, %p58
      %p60 = scmp.ne.s32.totalorder %s46, %s47
      %p61 = scmp.eq.s32.totalorder %s25, 1
      %p62 = por %p60, %p61
      %p64 = scmp.ne.s32.totalorder %s47, %s63
      %p65 = scmp.eq.s32.totalorder %s25, 0
      %p66 = por %p64, %p65
      %s67 = sadd.s32 %s27, 1
      %s68 = sadd.s32 %s34, 1
      %s69 = ssub.s32 %s26, %s38
      %s70 = ssub.s32 %s67, %s68
      %s71 = sor.u32 %s69, %s70
      %p72 = scmp.eq.s32.totalorder %s71, 0
      %s74 = sadd.s32 %s73, 1
      %s75 = scalar_select %p72, %s73, %s74
      %p78 = pneg %p72
      %p79 = scmp.eq.s32.totalorder %s19, 1
      %p80 = por %p78, %p79
      %p81 = scmp.ne.s32.totalorder %s73, %s76
      %p82 = scmp.eq.s32.totalorder %s19, 0
      %p83 = por %p81, %p82
      %p84 = scmp.ne.s32.totalorder %s73, %s76
      %p85 = scmp.eq.s32.totalorder %s24, 1
      %p86 = por %p84, %p85
      %p87 = scmp.ne.s32.totalorder %s76, %s77
      %p88 = scmp.eq.s32.totalorder %s24, 0
      %p89 = por %p87, %p88
      %p90 = scmp.ne.s32.totalorder %s76, %s77
      %p91 = scmp.eq.s32.totalorder %s25, 1
      %p92 = por %p90, %p91
      %p94 = scmp.ne.s32.totalorder %s77, %s93
      %p95 = scmp.eq.s32.totalorder %s25, 0
      %p96 = por %p94, %p95
      %s98 = sadd.s32 %s97, 1
      %p101 = scmp.eq.s32.totalorder %s19, 1
      %p102 = scmp.ne.s32.totalorder %s97, %s99
      %p103 = scmp.eq.s32.totalorder %s19, 0
      %p104 = por %p102, %p103
      %p105 = scmp.ne.s32.totalorder %s97, %s99
      %p106 = scmp.eq.s32.totalorder %s24, 1
      %p107 = por %p105, %p106
      %p108 = scmp.ne.s32.totalorder %s99, %s100
      %p109 = scmp.eq.s32.totalorder %s24, 0
      %p110 = por %p108, %p109
      %p111 = scmp.ne.s32.totalorder %s99, %s100
      %p112 = scmp.eq.s32.totalorder %s25, 1
      %p113 = por %p111, %p112
      %p115 = scmp.ne.s32.totalorder %s100, %s114
      %p116 = scmp.eq.s32.totalorder %s25, 0
      %p117 = por %p115, %p116
      %s119 = sadd.s32 %s118, 1
      %p122 = scmp.eq.s32.totalorder %s19, 1
      %p123 = scmp.ne.s32.totalorder %s118, %s120
      %p124 = scmp.eq.s32.totalorder %s19, 0
      %p125 = por %p123, %p124
      %p126 = scmp.ne.s32.totalorder %s118, %s120
      %p127 = scmp.eq.s32.totalorder %s24, 1
      %p128 = por %p126, %p127
      %p129 = scmp.ne.s32.totalorder %s120, %s121
      %p130 = scmp.eq.s32.totalorder %s24, 0
      %p131 = por %p129, %p130
      %p132 = scmp.ne.s32.totalorder %s120, %s121
      %p133 = scmp.eq.s32.totalorder %s25, 1
      %p134 = por %p132, %p133
      %p136 = scmp.ne.s32.totalorder %s121, %s135
      %p137 = scmp.eq.s32.totalorder %s25, 0
      %p138 = por %p136, %p137
      %s139 = ssub.s32 %s26, %s38
      %s140 = ssub.s32 %s27, %s34
      %s141 = sor.u32 %s139, %s140
      %p142 = scmp.eq.s32.totalorder %s141, 0
      %s144 = sadd.s32 %s143, 1
      %s145 = scalar_select %p142, %s143, %s144
      %p148 = pneg %p142
      %p149 = scmp.eq.s32.totalorder %s19, 1
      %p150 = por %p148, %p149
      %p151 = scmp.ne.s32.totalorder %s143, %s146
      %p152 = scmp.eq.s32.totalorder %s19, 0
      %p153 = por %p151, %p152
      %p154 = scmp.ne.s32.totalorder %s143, %s146
      %p155 = scmp.eq.s32.totalorder %s24, 1
      %p156 = por %p154, %p155
      %p157 = scmp.ne.s32.totalorder %s146, %s147
      %p158 = scmp.eq.s32.totalorder %s24, 0
      %p159 = por %p157, %p158
      %p160 = scmp.ne.s32.totalorder %s146, %s147
      %p161 = scmp.eq.s32.totalorder %s25, 1
      %p162 = por %p160, %p161
      %p164 = scmp.ne.s32.totalorder %s147, %s163
      %p165 = scmp.eq.s32.totalorder %s25, 0
      %p166 = por %p164, %p165
      %p167 = scmp.le.s32.totalorder 1, %s19
      %p168 = scmp.lt.s32.totalorder %s19, 3
      %p169 = pnand %p167, %p168
      %p170 = pneg %p169
      // Predicated region
      $region9: #{tpu_custom_call.1} parent=5 // pred_check
        _
      $region10: #{tpu_custom_call.1} parent=5 // pred_check_branch
        %172 = sbr.rel (%p169) target = $region12
      $region11: #{tpu_custom_call.1} parent=5 // pred_region
        %s173 = ssub.s32 %s19, 1
        // Predicated region
        $region13: #{tpu_custom_call.1} parent=11 // pred_check
          %p174 = pneg %p110
        $region14: #{tpu_custom_call.1} parent=11 // pred_check_branch
          %176 = sbr.rel (%p174) target = $region16
        $region15: #{tpu_custom_call.1} parent=11 // pred_region
          _
        $region16: #{tpu_custom_call.1} parent=11 // pred_fallthru
          _
        // Predicated region
        $region17: #{tpu_custom_call.1} parent=11 // pred_check
          %p177 = pneg %p131
        $region18: #{tpu_custom_call.1} parent=11 // pred_check_branch
          %179 = sbr.rel (%p177) target = $region20
        $region19: #{tpu_custom_call.1} parent=11 // pred_region
          _
        $region20: #{tpu_custom_call.1} parent=11 // pred_fallthru
          _
      $region12: #{tpu_custom_call.1} parent=5 // pred_fallthru
        _
      %p180 = scmp.lt.s32.totalorder %s19, 2
      // Predicated region
      $region21: #{tpu_custom_call.1} parent=5 // pred_check
        %p181 = pneg %p180
      $region22: #{tpu_custom_call.1} parent=5 // pred_check_branch
        %183 = sbr.rel (%p181) target = $region24
      $region23: #{tpu_custom_call.1} parent=5 // pred_region
        // Predicated region
        $region25: #{tpu_custom_call.1} parent=23 // pred_check
          %p184 = pneg %p53
        $region26: #{tpu_custom_call.1} parent=23 // pred_check_branch
          %186 = sbr.rel (%p184) target = $region28
        $region27: #{tpu_custom_call.1} parent=23 // pred_region
          %s187 = sand.u32 %s43, 1
          %s188 = scalar_lea.sflag [#allocation3], %s187
          %s189 = sand.u32 %s43, 1
          %s190 = smul.addr %s189, 8
          %s191 = scalar_lea.vmem [#allocation2], %s190
          %s193 = ssub.s32 128, 128
          %194 = vsyncadd %s188, %s193
          %s195 = smul.addr %s26, 2
          %s196 = sadd.s32 %s27, %s195
          %s197 = smul.addr %s196, 128
          %s198 = scalar_lea.hbm %s0, %s197
          %s200 = sshll.u32 %s191, 4
          %s201 = int_to_ptr.vmem [resolvable:$true] %s200
          %203 = dma.hbm_to_vmem [thread:$0]  %s198, 128, %s201, %s188
        $region28: #{tpu_custom_call.1} parent=23 // pred_fallthru
          _
        // Predicated region
        $region29: #{tpu_custom_call.1} parent=23 // pred_check
          %p204 = pneg %p83
        $region30: #{tpu_custom_call.1} parent=23 // pred_check_branch
          %206 = sbr.rel (%p204) target = $region32
        $region31: #{tpu_custom_call.1} parent=23 // pred_region
          %s207 = sand.u32 %s73, 1
          %s208 = scalar_lea.sflag [#allocation6], %s207
          %s209 = sand.u32 %s73, 1
          %s210 = smul.addr %s209, 8
          %s211 = scalar_lea.vmem [#allocation5], %s210
          %s212 = sadd.s32 %s27, 1
          %s214 = ssub.s32 128, 128
          %215 = vsyncadd %s208, %s214
          %s216 = smul.addr %s26, 2
          %s217 = sadd.s32 %s212, %s216
          %s218 = smul.addr %s217, 128
          %s219 = scalar_lea.hbm %s1, %s218
          %s221 = sshll.u32 %s211, 4
          %s222 = int_to_ptr.vmem [resolvable:$true] %s221
          %224 = dma.hbm_to_vmem [thread:$0]  %s219, 128, %s222, %s208
        $region32: #{tpu_custom_call.1} parent=23 // pred_fallthru
          _
      $region24: #{tpu_custom_call.1} parent=5 // pred_fallthru
        _
      %p225 = scmp.le.s32.totalorder 1, %s19
      %p226 = scmp.lt.s32.totalorder %s19, 3
      %p227 = pnand %p225, %p226
      %p228 = pneg %p227
      // Predicated region
      $region33: #{tpu_custom_call.1} parent=5 // pred_check
        _
      $region34: #{tpu_custom_call.1} parent=5 // pred_check_branch
        %230 = sbr.rel (%p227) target = $region36
      $region35: #{tpu_custom_call.1} parent=5 // pred_region
        %s231 = ssub.s32 %s19, 1
        %s232 = sand.u32 %s46, 1
        %s233 = scalar_lea.sflag [#allocation3], %s232
        %s234 = sand.u32 %s46, 1
        %s235 = smul.addr %s234, 8
        %s236 = scalar_lea.vmem [#allocation2], %s235
        // Predicated region
        $region37: #{tpu_custom_call.1} parent=35 // pred_check
          %p237 = pneg %p59
        $region38: #{tpu_custom_call.1} parent=35 // pred_check_branch
          %239 = sbr.rel (%p237) target = $region40
        $region39: #{tpu_custom_call.1} parent=35 // pred_region
          %240 = dma.done %s233, 128
        $region40: #{tpu_custom_call.1} parent=35 // pred_fallthru
          _
        %s241 = sand.u32 %s76, 1
        %s242 = scalar_lea.sflag [#allocation6], %s241
        %s243 = sand.u32 %s76, 1
        %s244 = smul.addr %s243, 8
        %s245 = scalar_lea.vmem [#allocation5], %s244
        // Predicated region
        $region41: #{tpu_custom_call.1} parent=35 // pred_check
          %p246 = pneg %p89
        $region42: #{tpu_custom_call.1} parent=35 // pred_check_branch
          %248 = sbr.rel (%p246) target = $region44
        $region43: #{tpu_custom_call.1} parent=35 // pred_region
          %249 = dma.done %s242, 128
        $region44: #{tpu_custom_call.1} parent=35 // pred_fallthru
          _
        %s250 = sand.u32 %s46, 1
        %s251 = scalar_lea.sflag [#allocation3], %s250
        %s252 = sand.u32 %s46, 1
        %s253 = smul.addr %s252, 8
        %s254 = scalar_lea.vmem [#allocation2], %s253
        %p255 = pneg %p59
        %p256 = pneg %p56
        %s257 = sand.u32 %s76, 1
        %s258 = scalar_lea.sflag [#allocation6], %s257
        %s259 = sand.u32 %s76, 1
        %s260 = smul.addr %s259, 8
        %s261 = scalar_lea.vmem [#allocation5], %s260
        %p262 = pneg %p89
        %p263 = pneg %p86
        %p264 = pneg %p110
        %p265 = pneg %p107
        %p266 = pneg %p131
        %p267 = pneg %p128
        %p268 = pneg %p159
        %p269 = pneg %p156
        %s270 = sand.u32 %s146, 1
        %s271 = scalar_lea.sflag [#allocation4], %s270
        %s272 = sand.u32 %s146, 1
        %s273 = smul.addr %s272, 16
        %s274 = scalar_lea.vmem [#allocation7], %s273
        %s275 = sadd.s32 %s29, 1
        %v276 = vld [vmem:[%s236] sm:$0xff]
        %v277 = vld [vmem:[%s245] sm:$0xff]
        %280 = vrot.lane.b32.xlu0 %v276, 127
        %v281 = vpop.permute.xlu0 %280
        %282 = vrot.lane.b32.xlu0 %v277, 127
        %v283 = vpop.permute.xlu0 %282
        %vm284 = vcmask 1039360
        %v285 = vsel %vm284, %v281, %v283
        %287 = vrot.lane.b32.xlu0 %v276, 126
        %v288 = vpop.permute.xlu0 %287
        %289 = vrot.lane.b32.xlu0 %v277, 126
        %v290 = vpop.permute.xlu0 %289
        %vm291 = vcmask 1031168
        %v292 = vsel %vm291, %v288, %v290
        %v294 = vld [vmem:[%s2] sm:$0xff]
        %v295 = vld [vmem:[%s2 + $0x8] sm:$0xff]
        %v296 = vld [vmem:[%s3] sm:$0xff]
        %v297 = vld [vmem:[%s3 + $0x8] sm:$0xff]
        %299 = vset.pattern.permute.xlu0 0
        %300 = vperm.xlu0 %299, %v296
        %v301 = vpop.permute.xlu0 %300
        %304 = vset.pattern.permute.xlu0 0
        %305 = vperm.xlu0 %304, %v297
        %v306 = vpop.permute.xlu0 %305
        %vm308 = vcmask 195584
        %v310 = vsel %vm308, %v294, 0
        %v313 = vsel %vm308, %v295, 0
        %315 = vmatprep.subr.mxu0 0.0
        %v316 = vand.u32 %v276, 4294901760
        %317 = vmatpush1.msra.mxu0 %v316
        %318 = vmatprep.subr.mxu0 0.0
        %v319 = vand.u32 %v285, 4294901760
        %320 = vmatpush1.msra.mxu0 %v319
        %321 = vmatprep.subr.mxu0 0.0
        %v322 = vand.u32 %v292, 4294901760
        %323 = vmatpush1.msra.mxu0 %v322
        %324 = vmatprep.subr.mxu0 0.0
        %325 = vmatpush1.msra.mxu0 0.0
        %326 = vmatprep.subr.mxu0 0.0
        %327 = vmatpush1.msra.mxu0 0.0
        %328 = vmatprep.subr.mxu0 0.0
        %329 = vmatpush1.msra.mxu0 0.0
        %330 = vmatprep.subr.mxu0 0.0
        %331 = vmatpush1.msra.mxu0 0.0
        %332 = vmatprep.subr.mxu0 0.0
        %333 = vmatpush1.msra.mxu0 0.0
        %334 = vmatprep.subr.mxu0 0.0
        %335 = vmatpush1.msra.mxu0 0.0
        %336 = vmatprep.subr.mxu0 0.0
        %337 = vmatpush1.msra.mxu0 0.0
        %338 = vmatprep.subr.mxu0 0.0
        %339 = vmatpush1.msra.mxu0 0.0
        %340 = vmatprep.subr.mxu0 0.0
        %341 = vmatpush1.msra.mxu0 0.0
        %342 = vmatprep.subr.mxu0 0.0
        %343 = vmatpush1.msra.mxu0 0.0
        %344 = vmatprep.subr.mxu0 0.0
        %345 = vmatpush1.msra.mxu0 0.0
        %346 = vmatprep.subr.mxu0 0.0
        %347 = vmatpush1.msra.mxu0 0.0
        %348 = vmatprep.subr.mxu0 0.0
        %349 = vmatpush1.msra.mxu0 0.0
        %350 = vmatprep.subr.mxu0 0.0
        %351 = vmatpush1.msra.mxu0 0.0
        %352 = vmatprep.subr.mxu0 0.0
        %353 = vmatpush1.msra.mxu0 0.0
        %354 = vmatprep.subr.mxu0 0.0
        %355 = vmatpush1.msra.mxu0 0.0
        %356 = vmatprep.subr.mxu0 0.0
        %357 = vmatpush1.msra.mxu0 0.0
        %358 = vmatprep.subr.mxu0 0.0
        %359 = vmatpush1.msra.mxu0 0.0
        %360 = vmatprep.subr.mxu0 0.0
        %361 = vmatpush1.msra.mxu0 0.0
        %362 = vmatprep.subr.mxu0 0.0
        %363 = vmatpush1.msra.mxu0 0.0
        %364 = vmatprep.subr.mxu0 0.0
        %365 = vmatpush1.msra.mxu0 0.0
        %366 = vmatprep.subr.mxu0 0.0
        %367 = vmatpush1.msra.mxu0 0.0
        %368 = vmatprep.subr.mxu0 0.0
        %369 = vmatpush1.msra.mxu0 0.0
        %370 = vmatprep.subr.mxu0 0.0
        %371 = vmatpush1.msra.mxu0 0.0
        %372 = vmatprep.subr.mxu0 0.0
        %373 = vmatpush1.msra.mxu0 0.0
        %374 = vmatprep.subr.mxu0 0.0
        %375 = vmatpush1.msra.mxu0 0.0
        %376 = vmatprep.subr.mxu0 0.0
        %377 = vmatpush1.msra.mxu0 0.0
        %378 = vmatprep.subr.mxu0 0.0
        %379 = vmatpush1.msra.mxu0 0.0
        %380 = vmatprep.subr.mxu0 0.0
        %381 = vmatpush1.msra.mxu0 0.0
        %382 = vmatprep.mubr.f32.mxu0 0.0
        %v383 = vand.u32 %v310, 4294901760
        %v384 = vsub.f32 %v310, %v383
        %v385 = vand.u32 %v384, 4294901760
        %v386 = vsub.f32 %v384, %v385
        %v387 = vand.u32 %v386, 4294901760
        %388 = vmatmul.mubr.f32.gmra.mrb[0].mxu0 %v387
        %v389 = vpop.f32.mrb[0].mxu0
        %v390 = vadd.f32 %v301, %v389
        %v391 = vpop.f32.mrb[0].mxu0
        %392 = vmatprep.mubr.f32.mxu0 0.0
        %v393 = vand.u32 %v313, 4294901760
        %v394 = vsub.f32 %v313, %v393
        %v395 = vand.u32 %v394, 4294901760
        %v396 = vsub.f32 %v394, %v395
        %v397 = vand.u32 %v396, 4294901760
        %398 = vmatmul.mubr.f32.gmra.mrb[0].mxu0 %v397
        %v399 = vpop.f32.mrb[0].mxu0
        %v400 = vadd.f32 %v306, %v399
        %v401 = vpop.f32.mrb[0].mxu0
        %402 = vdwg.mxu0
        %403 = vmatprep.subr.mxu0 0.0
        %v404 = vand.u32 %v276, 4294901760
        %v405 = vsub.f32 %v276, %v404
        %v406 = vand.u32 %v405, 4294901760
        %v407 = vsub.f32 %v405, %v406
        %v408 = vand.u32 %v407, 4294901760
        %409 = vmatpush1.msra.mxu0 %v408
        %410 = vmatprep.subr.mxu0 0.0
        %v411 = vand.u32 %v285, 4294901760
        %v412 = vsub.f32 %v285, %v411
        %v413 = vand.u32 %v412, 4294901760
        %v414 = vsub.f32 %v412, %v413
        %v415 = vand.u32 %v414, 4294901760
        %416 = vmatpush1.msra.mxu0 %v415
        %417 = vmatprep.subr.mxu0 0.0
        %v418 = vand.u32 %v292, 4294901760
        %v419 = vsub.f32 %v292, %v418
        %v420 = vand.u32 %v419, 4294901760
        %v421 = vsub.f32 %v419, %v420
        %v422 = vand.u32 %v421, 4294901760
        %423 = vmatpush1.msra.mxu0 %v422
        %424 = vmatprep.subr.mxu0 0.0
        %425 = vmatpush1.msra.mxu0 0.0
        %426 = vmatprep.subr.mxu0 0.0
        %427 = vmatpush1.msra.mxu0 0.0
        %428 = vmatprep.subr.mxu0 0.0
        %429 = vmatpush1.msra.mxu0 0.0
        %430 = vmatprep.subr.mxu0 0.0
        %431 = vmatpush1.msra.mxu0 0.0
        %432 = vmatprep.subr.mxu0 0.0
        %433 = vmatpush1.msra.mxu0 0.0
        %434 = vmatprep.subr.mxu0 0.0
        %435 = vmatpush1.msra.mxu0 0.0
        %436 = vmatprep.subr.mxu0 0.0
        %437 = vmatpush1.msra.mxu0 0.0
        %438 = vmatprep.subr.mxu0 0.0
        %439 = vmatpush1.msra.mxu0 0.0
        %440 = vmatprep.subr.mxu0 0.0
        %441 = vmatpush1.msra.mxu0 0.0
        %442 = vmatprep.subr.mxu0 0.0
        %443 = vmatpush1.msra.mxu0 0.0
        %444 = vmatprep.subr.mxu0 0.0
        %445 = vmatpush1.msra.mxu0 0.0
        %446 = vmatprep.subr.mxu0 0.0
        %447 = vmatpush1.msra.mxu0 0.0
        %448 = vmatprep.subr.mxu0 0.0
        %449 = vmatpush1.msra.mxu0 0.0
        %450 = vmatprep.subr.mxu0 0.0
        %451 = vmatpush1.msra.mxu0 0.0
        %452 = vmatprep.subr.mxu0 0.0
        %453 = vmatpush1.msra.mxu0 0.0
        %454 = vmatprep.subr.mxu0 0.0
        %455 = vmatpush1.msra.mxu0 0.0
        %456 = vmatprep.subr.mxu0 0.0
        %457 = vmatpush1.msra.mxu0 0.0
        %458 = vmatprep.subr.mxu0 0.0
        %459 = vmatpush1.msra.mxu0 0.0
        %460 = vmatprep.subr.mxu0 0.0
        %461 = vmatpush1.msra.mxu0 0.0
        %462 = vmatprep.subr.mxu0 0.0
        %463 = vmatpush1.msra.mxu0 0.0
        %464 = vmatprep.subr.mxu0 0.0
        %465 = vmatpush1.msra.mxu0 0.0
        %466 = vmatprep.subr.mxu0 0.0
        %467 = vmatpush1.msra.mxu0 0.0
        %468 = vmatprep.subr.mxu0 0.0
        %469 = vmatpush1.msra.mxu0 0.0
        %470 = vmatprep.subr.mxu0 0.0
        %471 = vmatpush1.msra.mxu0 0.0
        %472 = vmatprep.subr.mxu0 0.0
        %473 = vmatpush1.msra.mxu0 0.0
        %474 = vmatprep.subr.mxu0 0.0
        %475 = vmatpush1.msra.mxu0 0.0
        %476 = vmatprep.subr.mxu0 0.0
        %477 = vmatpush1.msra.mxu0 0.0
        %478 = vmatprep.subr.mxu0 0.0
        %479 = vmatpush1.msra.mxu0 0.0
        %480 = vmatprep.subr.mxu0 0.0
        %481 = vmatpush1.msra.mxu0 0.0
        %482 = vmatprep.mubr.f32.mxu0 0.0
        %v483 = vand.u32 %v310, 4294901760
        %484 = vmatmul.mubr.f32.gmra.mrb[0].mxu0 %v483
        %v485 = vpop.f32.mrb[0].mxu0
        %v486 = vadd.f32 %v390, %v485
        %v487 = vpop.f32.mrb[0].mxu0
        %488 = vmatprep.mubr.f32.mxu0 0.0
        %v489 = vand.u32 %v313, 4294901760
        %490 = vmatmul.mubr.f32.gmra.mrb[0].mxu0 %v489
        %v491 = vpop.f32.mrb[0].mxu0
        %v492 = vadd.f32 %v400, %v491
        %v493 = vpop.f32.mrb[0].mxu0
        %494 = vdwg.mxu0
        %495 = vmatprep.subr.mxu0 0.0
        %v496 = vand.u32 %v276, 4294901760
        %v497 = vsub.f32 %v276, %v496
        %498 = vmatpush1.msra.mxu0 %v497
        %499 = vmatprep.subr.mxu0 0.0
        %v500 = vand.u32 %v285, 4294901760
        %v501 = vsub.f32 %v285, %v500
        %502 = vmatpush1.msra.mxu0 %v501
        %503 = vmatprep.subr.mxu0 0.0
        %v504 = vand.u32 %v292, 4294901760
        %v505 = vsub.f32 %v292, %v504
        %506 = vmatpush1.msra.mxu0 %v505
        %507 = vmatprep.subr.mxu0 0.0
        %508 = vmatpush1.msra.mxu0 0.0
        %509 = vmatprep.subr.mxu0 0.0
        %510 = vmatpush1.msra.mxu0 0.0
        %511 = vmatprep.subr.mxu0 0.0
        %512 = vmatpush1.msra.mxu0 0.0
        %513 = vmatprep.subr.mxu0 0.0
        %514 = vmatpush1.msra.mxu0 0.0
        %515 = vmatprep.subr.mxu0 0.0
        %516 = vmatpush1.msra.mxu0 0.0
        %517 = vmatprep.subr.mxu0 0.0
        %518 = vmatpush1.msra.mxu0 0.0
        %519 = vmatprep.subr.mxu0 0.0
        %520 = vmatpush1.msra.mxu0 0.0
        %521 = vmatprep.subr.mxu0 0.0
        %522 = vmatpush1.msra.mxu0 0.0
        %523 = vmatprep.subr.mxu0 0.0
        %524 = vmatpush1.msra.mxu0 0.0
        %525 = vmatprep.subr.mxu0 0.0
        %526 = vmatpush1.msra.mxu0 0.0
        %527 = vmatprep.subr.mxu0 0.0
        %528 = vmatpush1.msra.mxu0 0.0
        %529 = vmatprep.subr.mxu0 0.0
        %530 = vmatpush1.msra.mxu0 0.0
        %531 = vmatprep.subr.mxu0 0.0
        %532 = vmatpush1.msra.mxu0 0.0
        %533 = vmatprep.subr.mxu0 0.0
        %534 = vmatpush1.msra.mxu0 0.0
        %535 = vmatprep.subr.mxu0 0.0
        %536 = vmatpush1.msra.mxu0 0.0
        %537 = vmatprep.subr.mxu0 0.0
        %538 = vmatpush1.msra.mxu0 0.0
        %539 = vmatprep.subr.mxu0 0.0
        %540 = vmatpush1.msra.mxu0 0.0
        %541 = vmatprep.subr.mxu0 0.0
        %542 = vmatpush1.msra.mxu0 0.0
        %543 = vmatprep.subr.mxu0 0.0
        %544 = vmatpush1.msra.mxu0 0.0
        %545 = vmatprep.subr.mxu0 0.0
        %546 = vmatpush1.msra.mxu0 0.0
        %547 = vmatprep.subr.mxu0 0.0
        %548 = vmatpush1.msra.mxu0 0.0
        %549 = vmatprep.subr.mxu0 0.0
        %550 = vmatpush1.msra.mxu0 0.0
        %551 = vmatprep.subr.mxu0 0.0
        %552 = vmatpush1.msra.mxu0 0.0
        %553 = vmatprep.subr.mxu0 0.0
        %554 = vmatpush1.msra.mxu0 0.0
        %555 = vmatprep.subr.mxu0 0.0
        %556 = vmatpush1.msra.mxu0 0.0
        %557 = vmatprep.subr.mxu0 0.0
        %558 = vmatpush1.msra.mxu0 0.0
        %559 = vmatprep.subr.mxu0 0.0
        %560 = vmatpush1.msra.mxu0 0.0
        %561 = vmatprep.subr.mxu0 0.0
        %562 = vmatpush1.msra.mxu0 0.0
        %563 = vmatprep.subr.mxu0 0.0
        %564 = vmatpush1.msra.mxu0 0.0
        %565 = vmatprep.mubr.f32.mxu0 0.0
        %v566 = vand.u32 %v310, 4294901760
        %v567 = vsub.f32 %v310, %v566
        %568 = vmatmul.mubr.f32.gmra.mrb[0].mxu0 %v567
        %v569 = vpop.f32.mrb[0].mxu0
        %v570 = vadd.f32 %v486, %v569
        %v571 = vpop.f32.mrb[0].mxu0
        %572 = vmatprep.mubr.f32.mxu0 0.0
        %v573 = vand.u32 %v313, 4294901760
        %v574 = vsub.f32 %v313, %v573
        %575 = vmatmul.mubr.f32.gmra.mrb[0].mxu0 %v574
        %v576 = vpop.f32.mrb[0].mxu0
        %v577 = vadd.f32 %v492, %v576
        %v578 = vpop.f32.mrb[0].mxu0
        %579 = vdwg.mxu0
        %580 = vmatprep.subr.mxu0 0.0
        %v581 = vand.u32 %v276, 4294901760
        %582 = vmatpush1.msra.mxu0 %v581
        %583 = vmatprep.subr.mxu0 0.0
        %v584 = vand.u32 %v285, 4294901760
        %585 = vmatpush1.msra.mxu0 %v584
        %586 = vmatprep.subr.mxu0 0.0
        %v587 = vand.u32 %v292, 4294901760
        %588 = vmatpush1.msra.mxu0 %v587
        %589 = vmatprep.subr.mxu0 0.0
        %590 = vmatpush1.msra.mxu0 0.0
        %591 = vmatprep.subr.mxu0 0.0
        %592 = vmatpush1.msra.mxu0 0.0
        %593 = vmatprep.subr.mxu0 0.0
        %594 = vmatpush1.msra.mxu0 0.0
        %595 = vmatprep.subr.mxu0 0.0
        %596 = vmatpush1.msra.mxu0 0.0
        %597 = vmatprep.subr.mxu0 0.0
        %598 = vmatpush1.msra.mxu0 0.0
        %599 = vmatprep.subr.mxu0 0.0
        %600 = vmatpush1.msra.mxu0 0.0
        %601 = vmatprep.subr.mxu0 0.0
        %602 = vmatpush1.msra.mxu0 0.0
        %603 = vmatprep.subr.mxu0 0.0
        %604 = vmatpush1.msra.mxu0 0.0
        %605 = vmatprep.subr.mxu0 0.0
        %606 = vmatpush1.msra.mxu0 0.0
        %607 = vmatprep.subr.mxu0 0.0
        %608 = vmatpush1.msra.mxu0 0.0
        %609 = vmatprep.subr.mxu0 0.0
        %610 = vmatpush1.msra.mxu0 0.0
        %611 = vmatprep.subr.mxu0 0.0
        %612 = vmatpush1.msra.mxu0 0.0
        %613 = vmatprep.subr.mxu0 0.0
        %614 = vmatpush1.msra.mxu0 0.0
        %615 = vmatprep.subr.mxu0 0.0
        %616 = vmatpush1.msra.mxu0 0.0
        %617 = vmatprep.subr.mxu0 0.0
        %618 = vmatpush1.msra.mxu0 0.0
        %619 = vmatprep.subr.mxu0 0.0
        %620 = vmatpush1.msra.mxu0 0.0
        %621 = vmatprep.subr.mxu0 0.0
        %622 = vmatpush1.msra.mxu0 0.0
        %623 = vmatprep.subr.mxu0 0.0
        %624 = vmatpush1.msra.mxu0 0.0
        %625 = vmatprep.subr.mxu0 0.0
        %626 = vmatpush1.msra.mxu0 0.0
        %627 = vmatprep.subr.mxu0 0.0
        %628 = vmatpush1.msra.mxu0 0.0
        %629 = vmatprep.subr.mxu0 0.0
        %630 = vmatpush1.msra.mxu0 0.0
        %631 = vmatprep.subr.mxu0 0.0
        %632 = vmatpush1.msra.mxu0 0.0
        %633 = vmatprep.subr.mxu0 0.0
        %634 = vmatpush1.msra.mxu0 0.0
        %635 = vmatprep.subr.mxu0 0.0
        %636 = vmatpush1.msra.mxu0 0.0
        %637 = vmatprep.subr.mxu0 0.0
        %638 = vmatpush1.msra.mxu0 0.0
        %639 = vmatprep.subr.mxu0 0.0
        %640 = vmatpush1.msra.mxu0 0.0
        %641 = vmatprep.subr.mxu0 0.0
        %642 = vmatpush1.msra.mxu0 0.0
        %643 = vmatprep.subr.mxu0 0.0
        %644 = vmatpush1.msra.mxu0 0.0
        %645 = vmatprep.subr.mxu0 0.0
        %646 = vmatpush1.msra.mxu0 0.0
        %647 = vmatprep.mubr.f32.mxu0 0.0
        %v648 = vand.u32 %v310, 4294901760
        %v649 = vsub.f32 %v310, %v648
        %v650 = vand.u32 %v649, 4294901760
        %651 = vmatmul.mubr.f32.gmra.mrb[0].mxu0 %v650
        %v652 = vpop.f32.mrb[0].mxu0
        %v653 = vadd.f32 %v570, %v652
        %v654 = vpop.f32.mrb[0].mxu0
        %655 = vmatprep.mubr.f32.mxu0 0.0
        %v656 = vand.u32 %v313, 4294901760
        %v657 = vsub.f32 %v313, %v656
        %v658 = vand.u32 %v657, 4294901760
        %659 = vmatmul.mubr.f32.gmra.mrb[0].mxu0 %v658
        %v660 = vpop.f32.mrb[0].mxu0
        %v661 = vadd.f32 %v577, %v660
        %v662 = vpop.f32.mrb[0].mxu0
        %663 = vdwg.mxu0
        %664 = vmatprep.subr.mxu0 0.0
        %v665 = vand.u32 %v276, 4294901760
        %v666 = vsub.f32 %v276, %v665
        %v667 = vand.u32 %v666, 4294901760
        %668 = vmatpush1.msra.mxu0 %v667
        %669 = vmatprep.subr.mxu0 0.0
        %v670 = vand.u32 %v285, 4294901760
        %v671 = vsub.f32 %v285, %v670
        %v672 = vand.u32 %v671, 4294901760
        %673 = vmatpush1.msra.mxu0 %v672
        %674 = vmatprep.subr.mxu0 0.0
        %v675 = vand.u32 %v292, 4294901760
        %v676 = vsub.f32 %v292, %v675
        %v677 = vand.u32 %v676, 4294901760
        %678 = vmatpush1.msra.mxu0 %v677
        %679 = vmatprep.subr.mxu0 0.0
        %680 = vmatpush1.msra.mxu0 0.0
        %681 = vmatprep.subr.mxu0 0.0
        %682 = vmatpush1.msra.mxu0 0.0
        %683 = vmatprep.subr.mxu0 0.0
        %684 = vmatpush1.msra.mxu0 0.0
        %685 = vmatprep.subr.mxu0 0.0
        %686 = vmatpush1.msra.mxu0 0.0
        %687 = vmatprep.subr.mxu0 0.0
        %688 = vmatpush1.msra.mxu0 0.0
        %689 = vmatprep.subr.mxu0 0.0
        %690 = vmatpush1.msra.mxu0 0.0
        %691 = vmatprep.subr.mxu0 0.0
        %692 = vmatpush1.msra.mxu0 0.0
        %693 = vmatprep.subr.mxu0 0.0
        %694 = vmatpush1.msra.mxu0 0.0
        %695 = vmatprep.subr.mxu0 0.0
        %696 = vmatpush1.msra.mxu0 0.0
        %697 = vmatprep.subr.mxu0 0.0
        %698 = vmatpush1.msra.mxu0 0.0
        %699 = vmatprep.subr.mxu0 0.0
        %700 = vmatpush1.msra.mxu0 0.0
        %701 = vmatprep.subr.mxu0 0.0
        %702 = vmatpush1.msra.mxu0 0.0
        %703 = vmatprep.subr.mxu0 0.0
        %704 = vmatpush1.msra.mxu0 0.0
        %705 = vmatprep.subr.mxu0 0.0
        %706 = vmatpush1.msra.mxu0 0.0
        %707 = vmatprep.subr.mxu0 0.0
        %708 = vmatpush1.msra.mxu0 0.0
        %709 = vmatprep.subr.mxu0 0.0
        %710 = vmatpush1.msra.mxu0 0.0
        %711 = vmatprep.subr.mxu0 0.0
        %712 = vmatpush1.msra.mxu0 0.0
        %713 = vmatprep.subr.mxu0 0.0
        %714 = vmatpush1.msra.mxu0 0.0
        %715 = vmatprep.subr.mxu0 0.0
        %716 = vmatpush1.msra.mxu0 0.0
        %717 = vmatprep.subr.mxu0 0.0
        %718 = vmatpush1.msra.mxu0 0.0
        %719 = vmatprep.subr.mxu0 0.0
        %720 = vmatpush1.msra.mxu0 0.0
        %721 = vmatprep.subr.mxu0 0.0
        %722 = vmatpush1.msra.mxu0 0.0
        %723 = vmatprep.subr.mxu0 0.0
        %724 = vmatpush1.msra.mxu0 0.0
        %725 = vmatprep.subr.mxu0 0.0
        %726 = vmatpush1.msra.mxu0 0.0
        %727 = vmatprep.subr.mxu0 0.0
        %728 = vmatpush1.msra.mxu0 0.0
        %729 = vmatprep.subr.mxu0 0.0
        %730 = vmatpush1.msra.mxu0 0.0
        %731 = vmatprep.subr.mxu0 0.0
        %732 = vmatpush1.msra.mxu0 0.0
        %733 = vmatprep.subr.mxu0 0.0
        %734 = vmatpush1.msra.mxu0 0.0
        %735 = vmatprep.subr.mxu0 0.0
        %736 = vmatpush1.msra.mxu0 0.0
        %737 = vmatprep.mubr.f32.mxu0 0.0
        %v738 = vand.u32 %v310, 4294901760
        %739 = vmatmul.mubr.f32.gmra.mrb[0].mxu0 %v738
        %v740 = vpop.f32.mrb[0].mxu0
        %v741 = vadd.f32 %v653, %v740
        %v742 = vpop.f32.mrb[0].mxu0
        %743 = vmatprep.mubr.f32.mxu0 0.0
        %v744 = vand.u32 %v313, 4294901760
        %745 = vmatmul.mubr.f32.gmra.mrb[0].mxu0 %v744
        %v746 = vpop.f32.mrb[0].mxu0
        %v747 = vadd.f32 %v661, %v746
        %v748 = vpop.f32.mrb[0].mxu0
        %749 = vdwg.mxu0
        %750 = vmatprep.subr.mxu0 0.0
        %v751 = vand.u32 %v276, 4294901760
        %752 = vmatpush1.msra.mxu0 %v751
        %753 = vmatprep.subr.mxu0 0.0
        %v754 = vand.u32 %v285, 4294901760
        %755 = vmatpush1.msra.mxu0 %v754
        %756 = vmatprep.subr.mxu0 0.0
        %v757 = vand.u32 %v292, 4294901760
        %758 = vmatpush1.msra.mxu0 %v757
        %759 = vmatprep.subr.mxu0 0.0
        %760 = vmatpush1.msra.mxu0 0.0
        %761 = vmatprep.subr.mxu0 0.0
        %762 = vmatpush1.msra.mxu0 0.0
        %763 = vmatprep.subr.mxu0 0.0
        %764 = vmatpush1.msra.mxu0 0.0
        %765 = vmatprep.subr.mxu0 0.0
        %766 = vmatpush1.msra.mxu0 0.0
        %767 = vmatprep.subr.mxu0 0.0
        %768 = vmatpush1.msra.mxu0 0.0
        %769 = vmatprep.subr.mxu0 0.0
        %770 = vmatpush1.msra.mxu0 0.0
        %771 = vmatprep.subr.mxu0 0.0
        %772 = vmatpush1.msra.mxu0 0.0
        %773 = vmatprep.subr.mxu0 0.0
        %774 = vmatpush1.msra.mxu0 0.0
        %775 = vmatprep.subr.mxu0 0.0
        %776 = vmatpush1.msra.mxu0 0.0
        %777 = vmatprep.subr.mxu0 0.0
        %778 = vmatpush1.msra.mxu0 0.0
        %779 = vmatprep.subr.mxu0 0.0
        %780 = vmatpush1.msra.mxu0 0.0
        %781 = vmatprep.subr.mxu0 0.0
        %782 = vmatpush1.msra.mxu0 0.0
        %783 = vmatprep.subr.mxu0 0.0
        %784 = vmatpush1.msra.mxu0 0.0
        %785 = vmatprep.subr.mxu0 0.0
        %786 = vmatpush1.msra.mxu0 0.0
        %787 = vmatprep.subr.mxu0 0.0
        %788 = vmatpush1.msra.mxu0 0.0
        %789 = vmatprep.subr.mxu0 0.0
        %790 = vmatpush1.msra.mxu0 0.0
        %791 = vmatprep.subr.mxu0 0.0
        %792 = vmatpush1.msra.mxu0 0.0
        %793 = vmatprep.subr.mxu0 0.0
        %794 = vmatpush1.msra.mxu0 0.0
        %795 = vmatprep.subr.mxu0 0.0
        %796 = vmatpush1.msra.mxu0 0.0
        %797 = vmatprep.subr.mxu0 0.0
        %798 = vmatpush1.msra.mxu0 0.0
        %799 = vmatprep.subr.mxu0 0.0
        %800 = vmatpush1.msra.mxu0 0.0
        %801 = vmatprep.subr.mxu0 0.0
        %802 = vmatpush1.msra.mxu0 0.0
        %803 = vmatprep.subr.mxu0 0.0
        %804 = vmatpush1.msra.mxu0 0.0
        %805 = vmatprep.subr.mxu0 0.0
        %806 = vmatpush1.msra.mxu0 0.0
        %807 = vmatprep.subr.mxu0 0.0
        %808 = vmatpush1.msra.mxu0 0.0
        %809 = vmatprep.subr.mxu0 0.0
        %810 = vmatpush1.msra.mxu0 0.0
        %811 = vmatprep.subr.mxu0 0.0
        %812 = vmatpush1.msra.mxu0 0.0
        %813 = vmatprep.subr.mxu0 0.0
        %814 = vmatpush1.msra.mxu0 0.0
        %815 = vmatprep.subr.mxu0 0.0
        %816 = vmatpush1.msra.mxu0 0.0
        %817 = vmatprep.mubr.f32.mxu0 0.0
        %v818 = vand.u32 %v310, 4294901760
        %819 = vmatmul.mubr.f32.gmra.mrb[0].mxu0 %v818
        %v820 = vpop.f32.mrb[0].mxu0
        %v821 = vadd.f32 %v741, %v820
        %v822 = vpop.f32.mrb[0].mxu0
        %823 = vmatprep.mubr.f32.mxu0 0.0
        %v824 = vand.u32 %v313, 4294901760
        %825 = vmatmul.mubr.f32.gmra.mrb[0].mxu0 %v824
        %v826 = vpop.f32.mrb[0].mxu0
        %v827 = vadd.f32 %v747, %v826
        %v828 = vpop.f32.mrb[0].mxu0
        %829 = vdwg.mxu0
        %v830 = vmax.f32 %v821, 0.0
        %v831 = vmax.f32 %v827, 0.0
        %832 = vst [vmem:[%s274] sm:$0xff] %v830
        %833 = vst [vmem:[%s274 + $0x8] sm:$0xff] %v831
        %s834 = sand.u32 %s146, 1
        %s835 = scalar_lea.sflag [#allocation4], %s834
        %s836 = sand.u32 %s146, 1
        %s837 = smul.addr %s836, 16
        %s838 = scalar_lea.vmem [#allocation7], %s837
        // Predicated region
        $region45: #{tpu_custom_call.1} parent=35 // pred_check
          %p839 = pneg %p156
        $region46: #{tpu_custom_call.1} parent=35 // pred_check_branch
          %841 = sbr.rel (%p839) target = $region48
        $region47: #{tpu_custom_call.1} parent=35 // pred_region
          %s843 = ssub.s32 256, 256
          %844 = vsyncadd %s835, %s843
          %s845 = smul.addr %s28, 2
          %s846 = sadd.s32 %s29, %s845
          %s847 = smul.addr %s846, 128
          %s848 = scalar_lea.hbm %s4, %s847
          %s849 = sshll.u32 %s838, 4
          %s850 = int_to_ptr.vmem [resolvable:$true] %s849
          %855 = dma.vmem_to_hbm [thread:$0]  %s850, 256, %s848, %s835, 128, 128, 8
        $region48: #{tpu_custom_call.1} parent=35 // pred_fallthru
          _
      $region36: #{tpu_custom_call.1} parent=5 // pred_fallthru
        _
      %p856 = scmp.le.s32.totalorder 2, %s19
      // Predicated region
      $region49: #{tpu_custom_call.1} parent=5 // pred_check
        %p857 = pneg %p856
      $region50: #{tpu_custom_call.1} parent=5 // pred_check_branch
        %859 = sbr.rel (%p857) target = $region52
      $region51: #{tpu_custom_call.1} parent=5 // pred_region
        %s860 = ssub.s32 %s19, 2
        // Predicated region
        $region53: #{tpu_custom_call.1} parent=51 // pred_check
          %p861 = pneg %p162
        $region54: #{tpu_custom_call.1} parent=51 // pred_check_branch
          %863 = sbr.rel (%p861) target = $region56
        $region55: #{tpu_custom_call.1} parent=51 // pred_region
          %s864 = sand.u32 %s147, 1
          %s865 = scalar_lea.sflag [#allocation4], %s864
          %s866 = sand.u32 %s147, 1
          %s867 = smul.addr %s866, 16
          %s868 = scalar_lea.vmem [#allocation7], %s867
          %869 = dma.done %s865, 256
        $region56: #{tpu_custom_call.1} parent=51 // pred_fallthru
          _
      $region52: #{tpu_custom_call.1} parent=5 // pred_fallthru
        _
    $region6: #{tpu_custom_call.1} parent=1 // loop_footer
      %s23 = sadd.s32 1, %s19
    $region7: #{tpu_custom_call.1} parent=1 // loop_footer_branch
      %18 = sbr.rel target = $region3
    $region8: #{tpu_custom_call.1} parent=1 // loop_exit
      _
    %870 = vsyncpa [#allocation3], 1
    %s871 = scalar_lea.sflag [#allocation3], 1
    %872 = vsyncpa %s871, 1
    %873 = vsyncpa [#allocation6], 1
    %s874 = scalar_lea.sflag [#allocation6], 1
    %875 = vsyncpa %s874, 1
    %876 = vsyncpa [#allocation4], 1
    %s877 = scalar_lea.sflag [#allocation4], 1
    %878 = vsyncpa %s877, 1

</llo_original>
